<compile_context>
chip_gen: v6e
topology: v6e:2x2x1
jax: 0.10.0
libtpu: 0.0.40
codegen_flags: <defaults>
</compile_context>

<pallas_src>
import functools

import numpy as np
import jax
import jax.numpy as jnp
from jax import lax
from jax.experimental import pallas as pl
from jax.experimental.pallas import tpu as pltpu

REVIN_EPS = 1e-5
BN_EPS = 1e-5
BN_SCALE = float(1.0 / np.sqrt(1.0 + BN_EPS))  # eval-mode BatchNorm2d(1) at init


def _tsmixer_kernel(n_mixers, tb,
                    x_ref, wt_ref, bt_ref, w1_ref, b1_ref, w2_ref, b2_ref,
                    wp_ref, bp_ref, rs_ref, rb_ref, o_ref):
    f32 = jnp.float32
    cdt = wt_ref.dtype  # matmul-operand dtype (bf16 or f32); accumulation is f32

    x = x_ref[...].astype(f32)                   # (TB, L, F)
    _, L, F = x.shape
    O = wp_ref.shape[0]

    # ---- RevIN normalize: mean / unbiased std over the time axis ------------
    mean = jnp.mean(x, axis=1, keepdims=True)                         # (TB,1,F)
    var = jnp.sum((x - mean) ** 2, axis=1, keepdims=True) * (1.0 / (L - 1))
    std = jnp.sqrt(var)                                               # (TB,1,F)
    inv_std = 1.0 / (std + REVIN_EPS)        # reciprocal once, multiply below
    scale = rs_ref[...].astype(f32)                                   # (1,F)
    bias = rb_ref[...].astype(f32)                                    # (1,F)
    out = (x - mean) * inv_std * scale + bias                         # (TB,L,F)

    # ---- mixer stack: real loop (bounds live ranges), dynamic weight index --
    def mixer_step(i, out):
        # time mixing: out[b] <- relu(wt_i @ out[b] + bt_i) + out[b]
        # (BatchNorm scale folded into wt_i).  Single batched contraction:
        # wt_i is broadcast over the batch dim so Mosaic sees a plain batched
        # matmul (rank-2 x rank-3 contractions are not supported in-kernel).
        res1 = out
        wt_b = jnp.broadcast_to(wt_ref[i][None], (tb, L, L))          # (TB,L,L)
        h = jnp.einsum("btl,blf->btf", wt_b, out.astype(cdt),
                       preferred_element_type=f32)                    # (TB,L,F)
        h = h + bt_ref[i][None]                                       # (1,L,1)
        out = jnp.maximum(h, 0.0) + res1

        # feature mixing: one (TB*L, F) slab through F -> H -> F
        # (w1/w2 pre-transposed host-side; BatchNorm scale folded into w1)
        res2 = out
        z = out.reshape(tb * L, F).astype(cdt)
        h1 = jnp.dot(z, w1_ref[i], preferred_element_type=f32) + b1_ref[i]
        h1 = jnp.maximum(h1, 0.0)
        h2 = jnp.dot(h1.astype(cdt), w2_ref[i],
                     preferred_element_type=f32) + b2_ref[i]
        return h2.reshape(tb, L, F) + res2

    out = lax.fori_loop(0, n_mixers, mixer_step, out)

    # ---- temporal projection (batched) + RevIN denormalize ------------------
    wp_b = jnp.broadcast_to(wp_ref[...][None], (tb, O, L))            # (TB,O,L)
    y = jnp.einsum("bol,blf->bof", wp_b, out.astype(cdt),
                   preferred_element_type=f32)                        # (TB,O,F)
    y = y + bp_ref[...][None]                                         # (1,O,1)
    inv_scale = 1.0 / scale
    y = (y - bias) * inv_scale * std + mean                           # (TB,O,F)
    o_ref[...] = y.astype(o_ref.dtype)


def _default_batch_tile(B):
    """Largest divisor of B that still yields nb >= 2 grid steps, so the
    "parallel" batch axis can shard across both TensorCores on v7x.
    For production sizes, pass batch_tile explicitly: make tb*L a multiple of
    256 (v6e/v7x; 128 on v5e) and as large as the VMEM budget allows (bigger
    feature-MLP slab matmuls, fewer per-step overheads)."""
    if B < 2:
        return B
    for tb in range(B // 2, 0, -1):
        if B % tb == 0:
            return tb
    return 1


def _default_vmem_limit_bytes():
    """v5e/v6e have 128 MiB physical VMEM -> large scoped budget; v7x has only
    64 MiB -> leave headroom."""
    try:
        kind = jax.devices()[0].device_kind.lower()
    except Exception:
        kind = ""
    if "v5" in kind or "v6" in kind:
        return 96 * 1024 * 1024
    return 48 * 1024 * 1024


def tsmixer_forward(x, params, *, n_mixers, batch_tile=None, vmem_limit_bytes=None):
    """x: (B, L, F); params from prepare_params(). Returns (B, out_dim, F)."""
    B, L, F = x.shape
    assert L >= 2, "unbiased std over the time axis requires L >= 2"
    O = params["wp"].shape[0]

    tb = _default_batch_tile(B) if batch_tile is None else batch_tile
    assert B % tb == 0
    nb = B // tb
    if vmem_limit_bytes is None:
        vmem_limit_bytes = _default_vmem_limit_bytes()

    kernel = functools.partial(_tsmixer_kernel, n_mixers, tb)

    # Weights / biases / RevIN params are reused identically by every grid
    # step: keep them whole-array resident in VMEM (one copy, no per-step
    # double buffering) instead of routing them through the block pipeline.
    resident = pl.BlockSpec(memory_space=pltpu.MemorySpace.VMEM)

    return pl.pallas_call(
        kernel,
        out_shape=jax.ShapeDtypeStruct((B, O, F), x.dtype),
        grid_spec=pltpu.PrefetchScalarGridSpec(
            num_scalar_prefetch=0,
            grid=(nb,),
            in_specs=[
                pl.BlockSpec((tb, L, F), lambda g: (g, 0, 0)),  # x (pipelined)
                resident,   # wt  (M,L,L)  BN folded
                resident,   # bt  (M,L,1)
                resident,   # w1  (M,F,H)  pre-transposed, BN folded
                resident,   # b1  (M,1,H)
                resident,   # w2  (M,H,F)  pre-transposed
                resident,   # b2  (M,1,F)
                resident,   # wp  (O,L)
                resident,   # bp  (O,1)
                resident,   # rscale (1,F)
                resident,   # rbias  (1,F)
            ],
            out_specs=pl.BlockSpec((tb, O, F), lambda g: (g, 0, 0)),
        ),
        compiler_params=pltpu.CompilerParams(
            dimension_semantics=("parallel",),   # batch steps are independent
            vmem_limit_bytes=vmem_limit_bytes,
        ),
    )(x, params["wt"], params["bt"], params["w1"], params["b1"],
      params["w2"], params["b2"], params["wp"], params["bp"],
      params["rscale"], params["rbias"])


def prepare_params(raw, *, compute_dtype=jnp.float32):
    """Host-side repack: fold eval-mode BatchNorm scale into wt/w1, pre-transpose
    the feature-MLP weights, reshape time/proj biases to columns, cast matmul
    weights to `compute_dtype` (bf16 on v6e/v7x); biases / RevIN stay f32."""
    M, L, _ = raw["wt"].shape
    f32 = jnp.float32
    return {
        "wt": (BN_SCALE * raw["wt"].astype(f32)).astype(compute_dtype),            # (M,L,L)
        "bt": raw["bt"].astype(f32).reshape(M, L, 1),                              # (M,L,1)
        "w1": (BN_SCALE * jnp.swapaxes(raw["w1"].astype(f32), 1, 2)).astype(compute_dtype),  # (M,F,H)
        "b1": raw["b1"].astype(f32).reshape(M, 1, -1),                             # (M,1,H)
        "w2": jnp.swapaxes(raw["w2"].astype(f32), 1, 2).astype(compute_dtype),     # (M,H,F)
        "b2": raw["b2"].astype(f32).reshape(M, 1, -1),                             # (M,1,F)
        "wp": raw["wp"].astype(compute_dtype),                                     # (O,L)
        "bp": raw["bp"].astype(f32).reshape(-1, 1),                                # (O,1)
        "rscale": raw["rscale"].astype(f32).reshape(1, -1),                        # (1,F)
        "rbias": raw["rbias"].astype(f32).reshape(1, -1),                          # (1,F)
    }


def make_raw_params(key, *, in_dim, feature_dim, hidden_dim, out_dim, n_mixers):
    """Parameters in the PyTorch module's native layouts."""
    ks = jax.random.split(key, 10)
    f32 = jnp.float32
    return {
        "wt": 0.1 * jax.random.normal(ks[0], (n_mixers, in_dim, in_dim), f32),
        "bt": 0.1 * jax.random.normal(ks[1], (n_mixers, in_dim), f32),
        "w1": 0.1 * jax.random.normal(ks[2], (n_mixers, hidden_dim, feature_dim), f32),
        "b1": 0.1 * jax.random.normal(ks[3], (n_mixers, hidden_dim), f32),
        "w2": 0.1 * jax.random.normal(ks[4], (n_mixers, feature_dim, hidden_dim), f32),
        "b2": 0.1 * jax.random.normal(ks[5], (n_mixers, feature_dim), f32),
        "wp": 0.1 * jax.random.normal(ks[6], (out_dim, in_dim), f32),
        "bp": 0.1 * jax.random.normal(ks[7], (out_dim,), f32),
        # RevIN affine params are learnable; use non-trivial values (away from 0)
        # to exercise the normalize/denormalize path.
        "rscale": 0.5 + jax.random.uniform(ks[8], (feature_dim,), f32),
        "rbias": 0.1 * jax.random.normal(ks[9], (feature_dim,), f32),
    }


def tsmixer_reference(x, raw, *, n_mixers):
    """Pure-JAX reference mirroring the PyTorch module (eval mode)."""
    mean = jnp.mean(x, axis=1, keepdims=True)
    std = jnp.std(x, axis=1, keepdims=True, ddof=1)
    out = (x - mean) / (std + REVIN_EPS) * raw["rscale"] + raw["rbias"]
    for i in range(n_mixers):
        res1 = out
        z = (out * BN_SCALE).transpose(0, 2, 1)                       # (B,F,L)
        h = jnp.maximum(z @ raw["wt"][i].T + raw["bt"][i], 0.0)
        out = h.transpose(0, 2, 1) + res1
        res2 = out
        z = out * BN_SCALE
        h1 = jnp.maximum(z @ raw["w1"][i].T + raw["b1"][i], 0.0)
        h2 = h1 @ raw["w2"][i].T + raw["b2"][i]
        out = h2 + res2
    y = (out.transpose(0, 2, 1) @ raw["wp"].T + raw["bp"]).transpose(0, 2, 1)
    y = (y - raw["rbias"]) / raw["rscale"] * std + mean
    return y


if __name__ == "__main__":
    B, in_dim, feature_dim, hidden_dim, out_dim, n_mixers = 4, 16, 8, 32, 8, 2

    key = jax.random.PRNGKey(0)
    kx, kp = jax.random.split(key)
    x = jax.random.normal(kx, (B, in_dim, feature_dim), jnp.float32)
    raw = make_raw_params(kp, in_dim=in_dim, feature_dim=feature_dim,
                          hidden_dim=hidden_dim, out_dim=out_dim,
                          n_mixers=n_mixers)
    assert np.all(np.abs(np.asarray(raw["rscale"])) > 1e-6)  # denorm divides by it
    ref = tsmixer_reference(x, raw, n_mixers=n_mixers)

    # f32 matmul operands: tight check against the pure-JAX reference
    # (default batch_tile resolves to 2, i.e. nb=2 grid steps).
    p32 = prepare_params(raw, compute_dtype=jnp.float32)
    out32 = jax.block_until_ready(
        tsmixer_forward(x, p32, n_mixers=n_mixers))
    assert out32.shape == (B, out_dim, feature_dim)
    np.testing.assert_allclose(np.asarray(out32), np.asarray(ref),
                               rtol=1e-4, atol=1e-4)

    # bf16 matmul operands with f32 accumulation: looser check
    pbf = prepare_params(raw, compute_dtype=jnp.bfloat16)
    outbf = jax.block_until_ready(
        tsmixer_forward(x, pbf, n_mixers=n_mixers, batch_tile=2))
    np.testing.assert_allclose(np.asarray(outbf), np.asarray(ref),
                               rtol=5e-2, atol=5e-2)

    print("KERNEL_OK")
</pallas_src>

<mosaic_0001>
module attributes {stable_mosaic.version = 11 : i64} {
  func.func @_tsmixer_kernel(%arg0: i32, %arg1: memref<2x16x8xf32, #tpu.memory_space<vmem>>, %arg2: memref<2x16x16xf32, #tpu.memory_space<vmem>>, %arg3: memref<2x16x1xf32, #tpu.memory_space<vmem>>, %arg4: memref<2x8x32xf32, #tpu.memory_space<vmem>>, %arg5: memref<2x1x32xf32, #tpu.memory_space<vmem>>, %arg6: memref<2x32x8xf32, #tpu.memory_space<vmem>>, %arg7: memref<2x1x8xf32, #tpu.memory_space<vmem>>, %arg8: memref<8x16xf32, #tpu.memory_space<vmem>>, %arg9: memref<8x1xf32, #tpu.memory_space<vmem>>, %arg10: memref<1x8xf32, #tpu.memory_space<vmem>>, %arg11: memref<1x8xf32, #tpu.memory_space<vmem>>, %arg12: memref<2x8x8xf32, #tpu.memory_space<vmem>>) attributes {dimension_semantics = [#tpu.dimension_semantics<parallel>], iteration_bounds = array<i64: 2>, scalar_prefetch = 0 : i64, scratch_operands = 0 : i64, tpu.core_type = #tpu.core_type<tc>, window_params = [{transform_indices = @transform_0, window_bounds = array<i64: 2, 16, 8>}, {pipeline_mode = #tpu.pipeline_mode<synchronous>, transform_indices = @transform_1, window_bounds = array<i64: 2, 16, 16>}, {pipeline_mode = #tpu.pipeline_mode<synchronous>, transform_indices = @transform_2, window_bounds = array<i64: 2, 16, 1>}, {pipeline_mode = #tpu.pipeline_mode<synchronous>, transform_indices = @transform_3, window_bounds = array<i64: 2, 8, 32>}, {pipeline_mode = #tpu.pipeline_mode<synchronous>, transform_indices = @transform_4, window_bounds = array<i64: 2, 1, 32>}, {pipeline_mode = #tpu.pipeline_mode<synchronous>, transform_indices = @transform_5, window_bounds = array<i64: 2, 32, 8>}, {pipeline_mode = #tpu.pipeline_mode<synchronous>, transform_indices = @transform_6, window_bounds = array<i64: 2, 1, 8>}, {pipeline_mode = #tpu.pipeline_mode<synchronous>, transform_indices = @transform_7, window_bounds = array<i64: 8, 16>}, {pipeline_mode = #tpu.pipeline_mode<synchronous>, transform_indices = @transform_8, window_bounds = array<i64: 8, 1>}, {pipeline_mode = #tpu.pipeline_mode<synchronous>, transform_indices = @transform_9, window_bounds = array<i64: 1, 8>}, {pipeline_mode = #tpu.pipeline_mode<synchronous>, transform_indices = @transform_10, window_bounds = array<i64: 1, 8>}, {transform_indices = @transform_11, window_bounds = array<i64: 2, 8, 8>}]} {
    %c0 = arith.constant 0 : index
    %c0_0 = arith.constant 0 : index
    %c0_1 = arith.constant 0 : index
    %0 = vector.load %arg1[%c0, %c0_0, %c0_1] : memref<2x16x8xf32, #tpu.memory_space<vmem>>, vector<2x16x8xf32>
    %cst = arith.constant dense<0.000000e+00> : vector<2x8xf32>
    %1 = vector.multi_reduction <add>, %0, %cst [1] : vector<2x16x8xf32> to vector<2x8xf32>
    %2 = vector.shape_cast %1 : vector<2x8xf32> to vector<2x1x8xf32>
    %cst_2 = arith.constant 1.600000e+01 : f32
    %3 = vector.broadcast %cst_2 : f32 to vector<2x1x8xf32>
    %4 = arith.divf %2, %3 : vector<2x1x8xf32>
    %5 = vector.broadcast %4 : vector<2x1x8xf32> to vector<2x16x8xf32>
    %6 = arith.subf %0, %5 : vector<2x16x8xf32>
    %7 = arith.mulf %6, %6 : vector<2x16x8xf32>
    %cst_3 = arith.constant dense<0.000000e+00> : vector<2x8xf32>
    %8 = vector.multi_reduction <add>, %7, %cst_3 [1] : vector<2x16x8xf32> to vector<2x8xf32>
    %9 = vector.shape_cast %8 : vector<2x8xf32> to vector<2x1x8xf32>
    %cst_4 = arith.constant 0.0666666701 : f32
    %10 = vector.broadcast %cst_4 : f32 to vector<2x1x8xf32>
    %11 = arith.mulf %9, %10 : vector<2x1x8xf32>
    %12 = math.sqrt %11 : vector<2x1x8xf32>
    %cst_5 = arith.constant 9.99999974E-6 : f32
    %13 = vector.broadcast %cst_5 : f32 to vector<2x1x8xf32>
    %14 = arith.addf %12, %13 : vector<2x1x8xf32>
    %cst_6 = arith.constant 1.000000e+00 : f32
    %15 = vector.broadcast %cst_6 : f32 to vector<2x1x8xf32>
    %16 = arith.divf %15, %14 : vector<2x1x8xf32>
    %c0_7 = arith.constant 0 : index
    %c0_8 = arith.constant 0 : index
    %17 = vector.load %arg10[%c0_7, %c0_8] : memref<1x8xf32, #tpu.memory_space<vmem>>, vector<1x8xf32>
    %c0_9 = arith.constant 0 : index
    %c0_10 = arith.constant 0 : index
    %18 = vector.load %arg11[%c0_9, %c0_10] : memref<1x8xf32, #tpu.memory_space<vmem>>, vector<1x8xf32>
    %19 = vector.broadcast %4 : vector<2x1x8xf32> to vector<2x16x8xf32>
    %20 = arith.subf %0, %19 : vector<2x16x8xf32>
    %21 = vector.broadcast %16 : vector<2x1x8xf32> to vector<2x16x8xf32>
    %22 = arith.mulf %20, %21 : vector<2x16x8xf32>
    %23 = vector.shape_cast %17 : vector<1x8xf32> to vector<1x1x8xf32>
    %24 = vector.broadcast %23 : vector<1x1x8xf32> to vector<2x16x8xf32>
    %25 = arith.mulf %22, %24 : vector<2x16x8xf32>
    %26 = vector.shape_cast %18 : vector<1x8xf32> to vector<1x1x8xf32>
    %27 = vector.broadcast %26 : vector<1x1x8xf32> to vector<2x16x8xf32>
    %28 = arith.addf %25, %27 : vector<2x16x8xf32>
    %c0_i32 = arith.constant 0 : i32
    %c2_i32 = arith.constant 2 : i32
    %29 = arith.addi %c0_i32, %c2_i32 : i32
    %c1_i32 = arith.constant 1 : i32
    %30 = scf.for %arg13 = %c0_i32 to %29 step %c1_i32 iter_args(%arg14 = %28) -> (vector<2x16x8xf32>)  : i32 {
      %53 = arith.index_cast %arg13 : i32 to index
      %c0_21 = arith.constant 0 : index
      %c0_22 = arith.constant 0 : index
      %54 = vector.load %arg2[%53, %c0_21, %c0_22] : memref<2x16x16xf32, #tpu.memory_space<vmem>>, vector<1x16x16xf32>
      %55 = vector.shape_cast %54 : vector<1x16x16xf32> to vector<16x16xf32>
      %56 = vector.shape_cast %55 : vector<16x16xf32> to vector<1x16x16xf32>
      %57 = vector.shape_cast %56 : vector<1x16x16xf32> to vector<1x16x16xf32>
      %58 = vector.broadcast %57 : vector<1x16x16xf32> to vector<2x16x16xf32>
      "tpu.trace_start"() <{level = 10 : i32, message = "btl,blf->btf"}> : () -> ()
      %cst_23 = arith.constant dense<0.000000e+00> : vector<2x16x8xf32>
      %59 = tpu.matmul %58, %arg14, %cst_23 {dimension_numbers = #tpu.dot_dimension_numbers<[2], [1], [1], [2], [0, 0, 0, 1, 1, 2], [0], [0]>} : vector<2x16x16xf32>, vector<2x16x8xf32>, vector<2x16x8xf32> -> vector<2x16x8xf32>
      "tpu.trace_stop"() : () -> ()
      %60 = arith.index_cast %arg13 : i32 to index
      %c0_24 = arith.constant 0 : index
      %c0_25 = arith.constant 0 : index
      %61 = vector.load %arg3[%60, %c0_24, %c0_25] : memref<2x16x1xf32, #tpu.memory_space<vmem>>, vector<1x16x1xf32>
      %62 = vector.shape_cast %61 : vector<1x16x1xf32> to vector<16x1xf32>
      %63 = vector.shape_cast %62 : vector<16x1xf32> to vector<1x16x1xf32>
      %64 = vector.broadcast %63 : vector<1x16x1xf32> to vector<2x16x8xf32>
      %65 = arith.addf %59, %64 : vector<2x16x8xf32>
      %cst_26 = arith.constant 0.000000e+00 : f32
      %66 = vector.broadcast %cst_26 : f32 to vector<2x16x8xf32>
      %67 = arith.maximumf %65, %66 : vector<2x16x8xf32>
      %68 = arith.addf %67, %arg14 : vector<2x16x8xf32>
      %69 = vector.shape_cast %68 : vector<2x16x8xf32> to vector<32x8xf32>
      %70 = arith.index_cast %arg13 : i32 to index
      %c0_27 = arith.constant 0 : index
      %c0_28 = arith.constant 0 : index
      %71 = vector.load %arg4[%70, %c0_27, %c0_28] : memref<2x8x32xf32, #tpu.memory_space<vmem>>, vector<1x8x32xf32>
      %72 = vector.shape_cast %71 : vector<1x8x32xf32> to vector<8x32xf32>
      %cst_29 = arith.constant dense<0.000000e+00> : vector<32x32xf32>
      %73 = tpu.matmul %69, %72, %cst_29 {dimension_numbers = #tpu.dot_dimension_numbers<[1], [0], [0], [1], [0, 0, 1, 1], [], []>} : vector<32x8xf32>, vector<8x32xf32>, vector<32x32xf32> -> vector<32x32xf32>
      %74 = arith.index_cast %arg13 : i32 to index
      %c0_30 = arith.constant 0 : index
      %c0_31 = arith.constant 0 : index
      %75 = vector.load %arg5[%74, %c0_30, %c0_31] : memref<2x1x32xf32, #tpu.memory_space<vmem>>, vector<1x1x32xf32>
      %76 = vector.shape_cast %75 : vector<1x1x32xf32> to vector<1x32xf32>
      %77 = vector.broadcast %76 : vector<1x32xf32> to vector<32x32xf32>
      %78 = arith.addf %73, %77 : vector<32x32xf32>
      %cst_32 = arith.constant 0.000000e+00 : f32
      %79 = vector.broadcast %cst_32 : f32 to vector<32x32xf32>
      %80 = arith.maximumf %78, %79 : vector<32x32xf32>
      %81 = arith.index_cast %arg13 : i32 to index
      %c0_33 = arith.constant 0 : index
      %c0_34 = arith.constant 0 : index
      %82 = vector.load %arg6[%81, %c0_33, %c0_34] : memref<2x32x8xf32, #tpu.memory_space<vmem>>, vector<1x32x8xf32>
      %83 = vector.shape_cast %82 : vector<1x32x8xf32> to vector<32x8xf32>
      %cst_35 = arith.constant dense<0.000000e+00> : vector<32x8xf32>
      %84 = tpu.matmul %80, %83, %cst_35 {dimension_numbers = #tpu.dot_dimension_numbers<[1], [0], [0], [1], [0, 0, 1, 1], [], []>} : vector<32x32xf32>, vector<32x8xf32>, vector<32x8xf32> -> vector<32x8xf32>
      %85 = arith.index_cast %arg13 : i32 to index
      %c0_36 = arith.constant 0 : index
      %c0_37 = arith.constant 0 : index
      %86 = vector.load %arg7[%85, %c0_36, %c0_37] : memref<2x1x8xf32, #tpu.memory_space<vmem>>, vector<1x1x8xf32>
      %87 = vector.shape_cast %86 : vector<1x1x8xf32> to vector<1x8xf32>
      %88 = vector.broadcast %87 : vector<1x8xf32> to vector<32x8xf32>
      %89 = arith.addf %84, %88 : vector<32x8xf32>
      %90 = vector.shape_cast %89 : vector<32x8xf32> to vector<2x16x8xf32>
      %91 = arith.addf %90, %68 : vector<2x16x8xf32>
      scf.yield %91 : vector<2x16x8xf32>
    }
    %c2_i32_11 = arith.constant 2 : i32
    %c0_12 = arith.constant 0 : index
    %c0_13 = arith.constant 0 : index
    %31 = vector.load %arg8[%c0_12, %c0_13] : memref<8x16xf32, #tpu.memory_space<vmem>>, vector<8x16xf32>
    %32 = vector.shape_cast %31 : vector<8x16xf32> to vector<1x8x16xf32>
    %33 = vector.shape_cast %32 : vector<1x8x16xf32> to vector<1x8x16xf32>
    %34 = vector.broadcast %33 : vector<1x8x16xf32> to vector<2x8x16xf32>
    "tpu.trace_start"() <{level = 10 : i32, message = "bol,blf->bof"}> : () -> ()
    %cst_14 = arith.constant dense<0.000000e+00> : vector<2x8x8xf32>
    %35 = tpu.matmul %34, %30, %cst_14 {dimension_numbers = #tpu.dot_dimension_numbers<[2], [1], [1], [2], [0, 0, 0, 1, 1, 2], [0], [0]>} : vector<2x8x16xf32>, vector<2x16x8xf32>, vector<2x8x8xf32> -> vector<2x8x8xf32>
    "tpu.trace_stop"() : () -> ()
    %c0_15 = arith.constant 0 : index
    %c0_16 = arith.constant 0 : index
    %36 = vector.load %arg9[%c0_15, %c0_16] : memref<8x1xf32, #tpu.memory_space<vmem>>, vector<8x1xf32>
    %37 = vector.shape_cast %36 : vector<8x1xf32> to vector<1x8x1xf32>
    %38 = vector.broadcast %37 : vector<1x8x1xf32> to vector<2x8x8xf32>
    %39 = arith.addf %35, %38 : vector<2x8x8xf32>
    %cst_17 = arith.constant 1.000000e+00 : f32
    %40 = vector.broadcast %cst_17 : f32 to vector<1x8xf32>
    %41 = arith.divf %40, %17 : vector<1x8xf32>
    %42 = vector.shape_cast %18 : vector<1x8xf32> to vector<1x1x8xf32>
    %43 = vector.broadcast %42 : vector<1x1x8xf32> to vector<2x8x8xf32>
    %44 = arith.subf %39, %43 : vector<2x8x8xf32>
    %45 = vector.shape_cast %41 : vector<1x8xf32> to vector<1x1x8xf32>
    %46 = vector.broadcast %45 : vector<1x1x8xf32> to vector<2x8x8xf32>
    %47 = arith.mulf %44, %46 : vector<2x8x8xf32>
    %48 = vector.broadcast %12 : vector<2x1x8xf32> to vector<2x8x8xf32>
    %49 = arith.mulf %47, %48 : vector<2x8x8xf32>
    %50 = vector.broadcast %4 : vector<2x1x8xf32> to vector<2x8x8xf32>
    %51 = arith.addf %49, %50 : vector<2x8x8xf32>
    %c0_18 = arith.constant 0 : index
    %c0_19 = arith.constant 0 : index
    %c0_20 = arith.constant 0 : index
    %52 = vector.load %arg12[%c0_18, %c0_19, %c0_20] : memref<2x8x8xf32, #tpu.memory_space<vmem>>, vector<2x8x8xf32>
    tpu.vector_store %arg12[%c0_18, %c0_19, %c0_20], %51 {strides = array<i32>} : memref<2x8x8xf32, #tpu.memory_space<vmem>>, vector<2x8x8xf32>,
    return
  }
  func.func @transform_0(%arg0: i32) -> (i32, i32, i32) {
    %c0_i32 = arith.constant 0 : i32
    %c0_i32_0 = arith.constant 0 : i32
    %c0_i32_1 = arith.constant 0 : i32
    return %arg0, %c0_i32, %c0_i32_0 : i32, i32, i32
  }
  func.func @transform_1(%arg0: i32) -> (i32, i32, i32) {
    %c0_i32 = arith.constant 0 : i32
    %c0_i32_0 = arith.constant 0 : i32
    %c0_i32_1 = arith.constant 0 : i32
    %c0_i32_2 = arith.constant 0 : i32
    return %c0_i32, %c0_i32_0, %c0_i32_1 : i32, i32, i32
  }
  func.func @transform_2(%arg0: i32) -> (i32, i32, i32) {
    %c0_i32 = arith.constant 0 : i32
    %c0_i32_0 = arith.constant 0 : i32
    %c0_i32_1 = arith.constant 0 : i32
    %c0_i32_2 = arith.constant 0 : i32
    return %c0_i32, %c0_i32_0, %c0_i32_1 : i32, i32, i32
  }
  func.func @transform_3(%arg0: i32) -> (i32, i32, i32) {
    %c0_i32 = arith.constant 0 : i32
    %c0_i32_0 = arith.constant 0 : i32
    %c0_i32_1 = arith.constant 0 : i32
    %c0_i32_2 = arith.constant 0 : i32
    return %c0_i32, %c0_i32_0, %c0_i32_1 : i32, i32, i32
  }
  func.func @transform_4(%arg0: i32) -> (i32, i32, i32) {
    %c0_i32 = arith.constant 0 : i32
    %c0_i32_0 = arith.constant 0 : i32
    %c0_i32_1 = arith.constant 0 : i32
    %c0_i32_2 = arith.constant 0 : i32
    return %c0_i32, %c0_i32_0, %c0_i32_1 : i32, i32, i32
  }
  func.func @transform_5(%arg0: i32) -> (i32, i32, i32) {
    %c0_i32 = arith.constant 0 : i32
    %c0_i32_0 = arith.constant 0 : i32
    %c0_i32_1 = arith.constant 0 : i32
    %c0_i32_2 = arith.constant 0 : i32
    return %c0_i32, %c0_i32_0, %c0_i32_1 : i32, i32, i32
  }
  func.func @transform_6(%arg0: i32) -> (i32, i32, i32) {
    %c0_i32 = arith.constant 0 : i32
    %c0_i32_0 = arith.constant 0 : i32
    %c0_i32_1 = arith.constant 0 : i32
    %c0_i32_2 = arith.constant 0 : i32
    return %c0_i32, %c0_i32_0, %c0_i32_1 : i32, i32, i32
  }
  func.func @transform_7(%arg0: i32) -> (i32, i32) {
    %c0_i32 = arith.constant 0 : i32
    %c0_i32_0 = arith.constant 0 : i32
    %c0_i32_1 = arith.constant 0 : i32
    return %c0_i32, %c0_i32_0 : i32, i32
  }
  func.func @transform_8(%arg0: i32) -> (i32, i32) {
    %c0_i32 = arith.constant 0 : i32
    %c0_i32_0 = arith.constant 0 : i32
    %c0_i32_1 = arith.constant 0 : i32
    return %c0_i32, %c0_i32_0 : i32, i32
  }
  func.func @transform_9(%arg0: i32) -> (i32, i32) {
    %c0_i32 = arith.constant 0 : i32
    %c0_i32_0 = arith.constant 0 : i32
    %c0_i32_1 = arith.constant 0 : i32
    return %c0_i32, %c0_i32_0 : i32, i32
  }
  func.func @transform_10(%arg0: i32) -> (i32, i32) {
    %c0_i32 = arith.constant 0 : i32
    %c0_i32_0 = arith.constant 0 : i32
    %c0_i32_1 = arith.constant 0 : i32
    return %c0_i32, %c0_i32_0 : i32, i32
  }
  func.func @transform_11(%arg0: i32) -> (i32, i32, i32) {
    %c0_i32 = arith.constant 0 : i32
    %c0_i32_0 = arith.constant 0 : i32
    %c0_i32_1 = arith.constant 0 : i32
    return %arg0, %c0_i32, %c0_i32_0 : i32, i32, i32
  }
}

</mosaic_0001>

<llo_original>
// kernel: tpu_custom_call.1
$region0: #{tpu_custom_call.1}
  #allocation0 [shape = 'u32[]', space=smem, size = 0x4, offset = 0x4, fixed_abs, tag = 'smem constant byte address 0x4 - core index']
  #allocation1 [shape = 'u32[144,128]{1,0:T(1,128)}', space=vmem, size = 0x12000, scoped, tag = 'internal scratch']
  %s0 = inlined_call_operand.vmem [shape: f32[4,16,8], index: 0, kind: input, shape index: {}]
  %s1 = inlined_call_operand.vmem [shape: f32[2,16,16], index: 1, kind: input, shape index: {}]
  %s2 = inlined_call_operand.vmem [shape: f32[2,16,1], index: 2, kind: input, shape index: {}]
  %s3 = inlined_call_operand.vmem [shape: f32[2,8,32], index: 3, kind: input, shape index: {}]
  %s4 = inlined_call_operand.vmem [shape: f32[2,1,32], index: 4, kind: input, shape index: {}]
  %s5 = inlined_call_operand.vmem [shape: f32[2,32,8], index: 5, kind: input, shape index: {}]
  %s6 = inlined_call_operand.vmem [shape: f32[2,1,8], index: 6, kind: input, shape index: {}]
  %s7 = inlined_call_operand.vmem [shape: f32[8,16], index: 7, kind: input, shape index: {}]
  %s8 = inlined_call_operand.vmem [shape: f32[8,1], index: 8, kind: input, shape index: {}]
  %s9 = inlined_call_operand.vmem [shape: f32[1,8], index: 9, kind: input, shape index: {}]
  %s10 = inlined_call_operand.vmem [shape: f32[1,8], index: 10, kind: input, shape index: {}]
  %s11 = inlined_call_operand.hbm [shape: f32[4,8,8], index: 11, kind: output, shape index: {}]
  %s12 = sld [smem:[#allocation0]]
  $region84: #{tpu_custom_call.1} parent=0
    _
  %s14 = ssub.s32 1, %s12
  %s15 = scalar_select 0, %s14, %s12
  $region1: #{tpu_custom_call.1} parent=0
    #allocation2 [shape = 'u8[16384]{0}', space=vmem, size = 0x4000, scoped, tag = 'output window, operand 0']
    #allocation3 [shape = 's32[2]{0}', space=sflag, size = 0x8, scoped, tag = 'scoped memory for tpu_custom_call.1']
    %16 = vsyncpa [#allocation3], 0
    %s17 = scalar_lea.sflag [#allocation3], 1
    %18 = vsyncpa %s17, 0
    loop: start=0, step=1, limit=4
    $region2: #{tpu_custom_call.1} parent=1 // loop_pre_header
      _
    $region3: #{tpu_custom_call.1} parent=1 // loop_header
      %s20 = sphi 0, %s24
      %p21 = scmp.ge.s32.totalorder %s20, 4
      %s30 = sphi 0, %s32
      %s33 = sphi 0, %s30
      %s34 = sphi 0, %s33
      %s50 = sphi 0, %s34
      %s54 = sphi 0, %s54
      %s56 = sphi 0, %s54
      %s57 = sphi 0, %s56
      %s71 = sphi 0, %s57
      %s75 = sphi 0, %s75
      %s77 = sphi 0, %s75
      %s78 = sphi 0, %s77
      %s92 = sphi 0, %s78
      %s96 = sphi 0, %s96
      %s98 = sphi 0, %s96
      %s99 = sphi 0, %s98
      %s113 = sphi 0, %s99
      %s117 = sphi 0, %s117
      %s119 = sphi 0, %s117
      %s120 = sphi 0, %s119
      %s134 = sphi 0, %s120
      %s138 = sphi 0, %s138
      %s140 = sphi 0, %s138
      %s141 = sphi 0, %s140
      %s155 = sphi 0, %s141
      %s159 = sphi 0, %s159
      %s161 = sphi 0, %s159
      %s162 = sphi 0, %s161
      %s176 = sphi 0, %s162
      %s180 = sphi 0, %s180
      %s182 = sphi 0, %s180
      %s183 = sphi 0, %s182
      %s197 = sphi 0, %s183
      %s201 = sphi 0, %s201
      %s203 = sphi 0, %s201
      %s204 = sphi 0, %s203
      %s218 = sphi 0, %s204
      %s222 = sphi 0, %s222
      %s224 = sphi 0, %s222
      %s225 = sphi 0, %s224
      %s239 = sphi 0, %s225
      %s243 = sphi 0, %s243
      %s245 = sphi 0, %s243
      %s246 = sphi 0, %s245
      %s260 = sphi 0, %s246
      %s266 = sphi 0, %s268
      %s269 = sphi 0, %s266
      %s270 = sphi 0, %s269
      %s286 = sphi 0, %s270
    $region4: #{tpu_custom_call.1} parent=1 // loop_header_branch
      %23 = sbr.rel (%p21) target = $region8
    $region5: #{tpu_custom_call.1} parent=1 // loop_body
      %s25 = ssub.s32 %s20, 1
      %s26 = ssub.s32 %s20, 2
      %s27 = sadd.s32 %s20, 1
      %s28 = ssub.s32 %s20, %s27
      %p29 = scmp.eq.s32.totalorder %s28, 0
      %s31 = sadd.s32 %s30, 1
      %s32 = scalar_select %p29, %s30, %s31
      %p35 = pneg %p29
      %p36 = scmp.eq.s32.totalorder %s20, 1
      %p37 = por %p35, %p36
      %p38 = scmp.ne.s32.totalorder %s30, %s33
      %p39 = scmp.eq.s32.totalorder %s20, 0
      %p40 = por %p38, %p39
      %p41 = scmp.ne.s32.totalorder %s30, %s33
      %p42 = scmp.eq.s32.totalorder %s25, 1
      %p43 = por %p41, %p42
      %p44 = scmp.ne.s32.totalorder %s33, %s34
      %p45 = scmp.eq.s32.totalorder %s25, 0
      %p46 = por %p44, %p45
      %p47 = scmp.ne.s32.totalorder %s33, %s34
      %p48 = scmp.eq.s32.totalorder %s26, 1
      %p49 = por %p47, %p48
      %p51 = scmp.ne.s32.totalorder %s34, %s50
      %p52 = scmp.eq.s32.totalorder %s26, 0
      %p53 = por %p51, %p52
      %s55 = sadd.s32 %s54, 1
      %p58 = scmp.eq.s32.totalorder %s20, 1
      %p59 = scmp.ne.s32.totalorder %s54, %s56
      %p60 = scmp.eq.s32.totalorder %s20, 0
      %p61 = por %p59, %p60
      %p62 = scmp.ne.s32.totalorder %s54, %s56
      %p63 = scmp.eq.s32.totalorder %s25, 1
      %p64 = por %p62, %p63
      %p65 = scmp.ne.s32.totalorder %s56, %s57
      %p66 = scmp.eq.s32.totalorder %s25, 0
      %p67 = por %p65, %p66
      %p68 = scmp.ne.s32.totalorder %s56, %s57
      %p69 = scmp.eq.s32.totalorder %s26, 1
      %p70 = por %p68, %p69
      %p72 = scmp.ne.s32.totalorder %s57, %s71
      %p73 = scmp.eq.s32.totalorder %s26, 0
      %p74 = por %p72, %p73
      %s76 = sadd.s32 %s75, 1
      %p79 = scmp.eq.s32.totalorder %s20, 1
      %p80 = scmp.ne.s32.totalorder %s75, %s77
      %p81 = scmp.eq.s32.totalorder %s20, 0
      %p82 = por %p80, %p81
      %p83 = scmp.ne.s32.totalorder %s75, %s77
      %p84 = scmp.eq.s32.totalorder %s25, 1
      %p85 = por %p83, %p84
      %p86 = scmp.ne.s32.totalorder %s77, %s78
      %p87 = scmp.eq.s32.totalorder %s25, 0
      %p88 = por %p86, %p87
      %p89 = scmp.ne.s32.totalorder %s77, %s78
      %p90 = scmp.eq.s32.totalorder %s26, 1
      %p91 = por %p89, %p90
      %p93 = scmp.ne.s32.totalorder %s78, %s92
      %p94 = scmp.eq.s32.totalorder %s26, 0
      %p95 = por %p93, %p94
      %s97 = sadd.s32 %s96, 1
      %p100 = scmp.eq.s32.totalorder %s20, 1
      %p101 = scmp.ne.s32.totalorder %s96, %s98
      %p102 = scmp.eq.s32.totalorder %s20, 0
      %p103 = por %p101, %p102
      %p104 = scmp.ne.s32.totalorder %s96, %s98
      %p105 = scmp.eq.s32.totalorder %s25, 1
      %p106 = por %p104, %p105
      %p107 = scmp.ne.s32.totalorder %s98, %s99
      %p108 = scmp.eq.s32.totalorder %s25, 0
      %p109 = por %p107, %p108
      %p110 = scmp.ne.s32.totalorder %s98, %s99
      %p111 = scmp.eq.s32.totalorder %s26, 1
      %p112 = por %p110, %p111
      %p114 = scmp.ne.s32.totalorder %s99, %s113
      %p115 = scmp.eq.s32.totalorder %s26, 0
      %p116 = por %p114, %p115
      %s118 = sadd.s32 %s117, 1
      %p121 = scmp.eq.s32.totalorder %s20, 1
      %p122 = scmp.ne.s32.totalorder %s117, %s119
      %p123 = scmp.eq.s32.totalorder %s20, 0
      %p124 = por %p122, %p123
      %p125 = scmp.ne.s32.totalorder %s117, %s119
      %p126 = scmp.eq.s32.totalorder %s25, 1
      %p127 = por %p125, %p126
      %p128 = scmp.ne.s32.totalorder %s119, %s120
      %p129 = scmp.eq.s32.totalorder %s25, 0
      %p130 = por %p128, %p129
      %p131 = scmp.ne.s32.totalorder %s119, %s120
      %p132 = scmp.eq.s32.totalorder %s26, 1
      %p133 = por %p131, %p132
      %p135 = scmp.ne.s32.totalorder %s120, %s134
      %p136 = scmp.eq.s32.totalorder %s26, 0
      %p137 = por %p135, %p136
      %s139 = sadd.s32 %s138, 1
      %p142 = scmp.eq.s32.totalorder %s20, 1
      %p143 = scmp.ne.s32.totalorder %s138, %s140
      %p144 = scmp.eq.s32.totalorder %s20, 0
      %p145 = por %p143, %p144
      %p146 = scmp.ne.s32.totalorder %s138, %s140
      %p147 = scmp.eq.s32.totalorder %s25, 1
      %p148 = por %p146, %p147
      %p149 = scmp.ne.s32.totalorder %s140, %s141
      %p150 = scmp.eq.s32.totalorder %s25, 0
      %p151 = por %p149, %p150
      %p152 = scmp.ne.s32.totalorder %s140, %s141
      %p153 = scmp.eq.s32.totalorder %s26, 1
      %p154 = por %p152, %p153
      %p156 = scmp.ne.s32.totalorder %s141, %s155
      %p157 = scmp.eq.s32.totalorder %s26, 0
      %p158 = por %p156, %p157
      %s160 = sadd.s32 %s159, 1
      %p163 = scmp.eq.s32.totalorder %s20, 1
      %p164 = scmp.ne.s32.totalorder %s159, %s161
      %p165 = scmp.eq.s32.totalorder %s20, 0
      %p166 = por %p164, %p165
      %p167 = scmp.ne.s32.totalorder %s159, %s161
      %p168 = scmp.eq.s32.totalorder %s25, 1
      %p169 = por %p167, %p168
      %p170 = scmp.ne.s32.totalorder %s161, %s162
      %p171 = scmp.eq.s32.totalorder %s25, 0
      %p172 = por %p170, %p171
      %p173 = scmp.ne.s32.totalorder %s161, %s162
      %p174 = scmp.eq.s32.totalorder %s26, 1
      %p175 = por %p173, %p174
      %p177 = scmp.ne.s32.totalorder %s162, %s176
      %p178 = scmp.eq.s32.totalorder %s26, 0
      %p179 = por %p177, %p178
      %s181 = sadd.s32 %s180, 1
      %p184 = scmp.eq.s32.totalorder %s20, 1
      %p185 = scmp.ne.s32.totalorder %s180, %s182
      %p186 = scmp.eq.s32.totalorder %s20, 0
      %p187 = por %p185, %p186
      %p188 = scmp.ne.s32.totalorder %s180, %s182
      %p189 = scmp.eq.s32.totalorder %s25, 1
      %p190 = por %p188, %p189
      %p191 = scmp.ne.s32.totalorder %s182, %s183
      %p192 = scmp.eq.s32.totalorder %s25, 0
      %p193 = por %p191, %p192
      %p194 = scmp.ne.s32.totalorder %s182, %s183
      %p195 = scmp.eq.s32.totalorder %s26, 1
      %p196 = por %p194, %p195
      %p198 = scmp.ne.s32.totalorder %s183, %s197
      %p199 = scmp.eq.s32.totalorder %s26, 0
      %p200 = por %p198, %p199
      %s202 = sadd.s32 %s201, 1
      %p205 = scmp.eq.s32.totalorder %s20, 1
      %p206 = scmp.ne.s32.totalorder %s201, %s203
      %p207 = scmp.eq.s32.totalorder %s20, 0
      %p208 = por %p206, %p207
      %p209 = scmp.ne.s32.totalorder %s201, %s203
      %p210 = scmp.eq.s32.totalorder %s25, 1
      %p211 = por %p209, %p210
      %p212 = scmp.ne.s32.totalorder %s203, %s204
      %p213 = scmp.eq.s32.totalorder %s25, 0
      %p214 = por %p212, %p213
      %p215 = scmp.ne.s32.totalorder %s203, %s204
      %p216 = scmp.eq.s32.totalorder %s26, 1
      %p217 = por %p215, %p216
      %p219 = scmp.ne.s32.totalorder %s204, %s218
      %p220 = scmp.eq.s32.totalorder %s26, 0
      %p221 = por %p219, %p220
      %s223 = sadd.s32 %s222, 1
      %p226 = scmp.eq.s32.totalorder %s20, 1
      %p227 = scmp.ne.s32.totalorder %s222, %s224
      %p228 = scmp.eq.s32.totalorder %s20, 0
      %p229 = por %p227, %p228
      %p230 = scmp.ne.s32.totalorder %s222, %s224
      %p231 = scmp.eq.s32.totalorder %s25, 1
      %p232 = por %p230, %p231
      %p233 = scmp.ne.s32.totalorder %s224, %s225
      %p234 = scmp.eq.s32.totalorder %s25, 0
      %p235 = por %p233, %p234
      %p236 = scmp.ne.s32.totalorder %s224, %s225
      %p237 = scmp.eq.s32.totalorder %s26, 1
      %p238 = por %p236, %p237
      %p240 = scmp.ne.s32.totalorder %s225, %s239
      %p241 = scmp.eq.s32.totalorder %s26, 0
      %p242 = por %p240, %p241
      %s244 = sadd.s32 %s243, 1
      %p247 = scmp.eq.s32.totalorder %s20, 1
      %p248 = scmp.ne.s32.totalorder %s243, %s245
      %p249 = scmp.eq.s32.totalorder %s20, 0
      %p250 = por %p248, %p249
      %p251 = scmp.ne.s32.totalorder %s243, %s245
      %p252 = scmp.eq.s32.totalorder %s25, 1
      %p253 = por %p251, %p252
      %p254 = scmp.ne.s32.totalorder %s245, %s246
      %p255 = scmp.eq.s32.totalorder %s25, 0
      %p256 = por %p254, %p255
      %p257 = scmp.ne.s32.totalorder %s245, %s246
      %p258 = scmp.eq.s32.totalorder %s26, 1
      %p259 = por %p257, %p258
      %p261 = scmp.ne.s32.totalorder %s246, %s260
      %p262 = scmp.eq.s32.totalorder %s26, 0
      %p263 = por %p261, %p262
      %s264 = ssub.s32 %s20, %s27
      %p265 = scmp.eq.s32.totalorder %s264, 0
      %s267 = sadd.s32 %s266, 1
      %s268 = scalar_select %p265, %s266, %s267
      %p271 = pneg %p265
      %p272 = scmp.eq.s32.totalorder %s20, 1
      %p273 = por %p271, %p272
      %p274 = scmp.ne.s32.totalorder %s266, %s269
      %p275 = scmp.eq.s32.totalorder %s20, 0
      %p276 = por %p274, %p275
      %p277 = scmp.ne.s32.totalorder %s266, %s269
      %p278 = scmp.eq.s32.totalorder %s25, 1
      %p279 = por %p277, %p278
      %p280 = scmp.ne.s32.totalorder %s269, %s270
      %p281 = scmp.eq.s32.totalorder %s25, 0
      %p282 = por %p280, %p281
      %p283 = scmp.ne.s32.totalorder %s269, %s270
      %p284 = scmp.eq.s32.totalorder %s26, 1
      %p285 = por %p283, %p284
      %p287 = scmp.ne.s32.totalorder %s270, %s286
      %p288 = scmp.eq.s32.totalorder %s26, 0
      %p289 = por %p287, %p288
      %p290 = scmp.le.s32.totalorder 1, %s20
      %p291 = scmp.lt.s32.totalorder %s20, 3
      %p292 = pnand %p290, %p291
      %p293 = pneg %p292
      // Predicated region
      $region9: #{tpu_custom_call.1} parent=5 // pred_check
        _
      $region10: #{tpu_custom_call.1} parent=5 // pred_check_branch
        %295 = sbr.rel (%p292) target = $region12
      $region11: #{tpu_custom_call.1} parent=5 // pred_region
        %s296 = ssub.s32 %s20, 1
        // Predicated region
        $region13: #{tpu_custom_call.1} parent=11 // pred_check
          %p297 = pneg %p67
        $region14: #{tpu_custom_call.1} parent=11 // pred_check_branch
          %299 = sbr.rel (%p297) target = $region16
        $region15: #{tpu_custom_call.1} parent=11 // pred_region
          _
        $region16: #{tpu_custom_call.1} parent=11 // pred_fallthru
          _
        // Predicated region
        $region17: #{tpu_custom_call.1} parent=11 // pred_check
          %p300 = pneg %p88
        $region18: #{tpu_custom_call.1} parent=11 // pred_check_branch
          %302 = sbr.rel (%p300) target = $region20
        $region19: #{tpu_custom_call.1} parent=11 // pred_region
          _
        $region20: #{tpu_custom_call.1} parent=11 // pred_fallthru
          _
        // Predicated region
        $region21: #{tpu_custom_call.1} parent=11 // pred_check
          %p303 = pneg %p109
        $region22: #{tpu_custom_call.1} parent=11 // pred_check_branch
          %305 = sbr.rel (%p303) target = $region24
        $region23: #{tpu_custom_call.1} parent=11 // pred_region
          _
        $region24: #{tpu_custom_call.1} parent=11 // pred_fallthru
          _
        // Predicated region
        $region25: #{tpu_custom_call.1} parent=11 // pred_check
          %p306 = pneg %p130
        $region26: #{tpu_custom_call.1} parent=11 // pred_check_branch
          %308 = sbr.rel (%p306) target = $region28
        $region27: #{tpu_custom_call.1} parent=11 // pred_region
          _
        $region28: #{tpu_custom_call.1} parent=11 // pred_fallthru
          _
        // Predicated region
        $region29: #{tpu_custom_call.1} parent=11 // pred_check
          %p309 = pneg %p151
        $region30: #{tpu_custom_call.1} parent=11 // pred_check_branch
          %311 = sbr.rel (%p309) target = $region32
        $region31: #{tpu_custom_call.1} parent=11 // pred_region
          _
        $region32: #{tpu_custom_call.1} parent=11 // pred_fallthru
          _
        // Predicated region
        $region33: #{tpu_custom_call.1} parent=11 // pred_check
          %p312 = pneg %p172
        $region34: #{tpu_custom_call.1} parent=11 // pred_check_branch
          %314 = sbr.rel (%p312) target = $region36
        $region35: #{tpu_custom_call.1} parent=11 // pred_region
          _
        $region36: #{tpu_custom_call.1} parent=11 // pred_fallthru
          _
        // Predicated region
        $region37: #{tpu_custom_call.1} parent=11 // pred_check
          %p315 = pneg %p193
        $region38: #{tpu_custom_call.1} parent=11 // pred_check_branch
          %317 = sbr.rel (%p315) target = $region40
        $region39: #{tpu_custom_call.1} parent=11 // pred_region
          _
        $region40: #{tpu_custom_call.1} parent=11 // pred_fallthru
          _
        // Predicated region
        $region41: #{tpu_custom_call.1} parent=11 // pred_check
          %p318 = pneg %p214
        $region42: #{tpu_custom_call.1} parent=11 // pred_check_branch
          %320 = sbr.rel (%p318) target = $region44
        $region43: #{tpu_custom_call.1} parent=11 // pred_region
          _
        $region44: #{tpu_custom_call.1} parent=11 // pred_fallthru
          _
        // Predicated region
        $region45: #{tpu_custom_call.1} parent=11 // pred_check
          %p321 = pneg %p235
        $region46: #{tpu_custom_call.1} parent=11 // pred_check_branch
          %323 = sbr.rel (%p321) target = $region48
        $region47: #{tpu_custom_call.1} parent=11 // pred_region
          _
        $region48: #{tpu_custom_call.1} parent=11 // pred_fallthru
          _
        // Predicated region
        $region49: #{tpu_custom_call.1} parent=11 // pred_check
          %p324 = pneg %p256
        $region50: #{tpu_custom_call.1} parent=11 // pred_check_branch
          %326 = sbr.rel (%p324) target = $region52
        $region51: #{tpu_custom_call.1} parent=11 // pred_region
          _
        $region52: #{tpu_custom_call.1} parent=11 // pred_fallthru
          _
      $region12: #{tpu_custom_call.1} parent=5 // pred_fallthru
        _
      %p327 = scmp.lt.s32.totalorder %s20, 2
      // Predicated region
      $region53: #{tpu_custom_call.1} parent=5 // pred_check
        %p328 = pneg %p327
      $region54: #{tpu_custom_call.1} parent=5 // pred_check_branch
        %330 = sbr.rel (%p328) target = $region56
      $region55: #{tpu_custom_call.1} parent=5 // pred_region
        // Predicated region
        $region57: #{tpu_custom_call.1} parent=55 // pred_check
          %p331 = pneg %p40
        $region58: #{tpu_custom_call.1} parent=55 // pred_check_branch
          %333 = sbr.rel (%p331) target = $region60
        $region59: #{tpu_custom_call.1} parent=55 // pred_region
          %s334 = smul.u32 2, %s20
          %p335 = scmp.lt.s32.totalorder %s334, 3
          %s336 = scalar_select %p335, %s334, 3
          %s337 = smul.addr %s336, 2
          %s338 = smul.addr %s337, 8
          %s339 = scalar_lea.vmem %s0, %s338
          %s340 = smul.u32 2, %s20
        $region60: #{tpu_custom_call.1} parent=55 // pred_fallthru
          _
      $region56: #{tpu_custom_call.1} parent=5 // pred_fallthru
        _
      %p341 = scmp.le.s32.totalorder 1, %s20
      %p342 = scmp.lt.s32.totalorder %s20, 3
      %p343 = pnand %p341, %p342
      %p344 = pneg %p343
      // Predicated region
      $region61: #{tpu_custom_call.1} parent=5 // pred_check
        _
      $region62: #{tpu_custom_call.1} parent=5 // pred_check_branch
        %346 = sbr.rel (%p343) target = $region64
      $region63: #{tpu_custom_call.1} parent=5 // pred_region
        %s347 = ssub.s32 %s20, 1
        %s348 = smul.u32 2, %s25
        %p349 = scmp.lt.s32.totalorder %s348, 3
        %s350 = scalar_select %p349, %s348, 3
        %s351 = smul.addr %s350, 2
        %s352 = smul.addr %s351, 8
        %s353 = scalar_lea.vmem %s0, %s352
        %p354 = pneg %p46
        %p355 = pneg %p43
        %p356 = pneg %p67
        %p357 = pneg %p64
        %p358 = pneg %p88
        %p359 = pneg %p85
        %p360 = pneg %p109
        %p361 = pneg %p106
        %p362 = pneg %p130
        %p363 = pneg %p127
        %p364 = pneg %p151
        %p365 = pneg %p148
        %p366 = pneg %p172
        %p367 = pneg %p169
        %p368 = pneg %p193
        %p369 = pneg %p190
        %p370 = pneg %p214
        %p371 = pneg %p211
        %p372 = pneg %p235
        %p373 = pneg %p232
        %p374 = pneg %p256
        %p375 = pneg %p253
        %p376 = pneg %p282
        %p377 = pneg %p279
        %s378 = sand.u32 %s269, 1
        %s379 = scalar_lea.sflag [#allocation3], %s378
        %s380 = sand.u32 %s269, 1
        %s381 = smul.addr %s380, 16
        %s382 = scalar_lea.vmem [#allocation2], %s381
        %s383 = smul.u32 2, %s25
        %p384 = scmp.lt.s32.totalorder %s383, 3
        %s385 = scalar_select %p384, %s383, 3
        %s386 = smul.addr %s385, 2
        %s387 = smul.addr %s386, 8
        %s388 = scalar_lea.vmem %s0, %s387
        %s389 = smul.u32 2, %s25
        %s390 = smul.u32 2, %s25
        %v391 = vld [vmem:[%s388] sm:$0xff]
        %v392 = vld [vmem:[%s388 + $0x8] sm:$0xff]
        %v393 = vld [vmem:[%s388 + $0x10] sm:$0xff]
        %v394 = vld [vmem:[%s388 + $0x18] sm:$0xff]
        %vm395 = vcmask 64512
        %v396 = vsel %vm395, %v391, 0.0
        %v397 = vsel %vm395, %v392, 0.0
        %v398 = vadd.f32 %v396, %v397
        %v399 = vrot.slane %v398, 4
        %v400 = vadd.f32 %v398, %v399
        %v401 = vrot.slane %v400, 2
        %v402 = vadd.f32 %v400, %v401
        %v403 = vrot.slane %v402, 1
        %v404 = vadd.f32 %v402, %v403
        %v405 = vsel %vm395, %v393, 0.0
        %v406 = vsel %vm395, %v394, 0.0
        %v407 = vadd.f32 %v405, %v406
        %v408 = vrot.slane %v407, 4
        %v409 = vadd.f32 %v407, %v408
        %v410 = vrot.slane %v409, 2
        %v411 = vadd.f32 %v409, %v410
        %v412 = vrot.slane %v411, 1
        %v413 = vadd.f32 %v411, %v412
        %v414 = vrcp.pop 16.0
        %v415 = vmul.f32 %v404, %v414
        %v416 = vmul.f32 %v413, %v414
        %v417 = vsub.f32 %v391, %v415
        %v418 = vsub.f32 %v392, %v415
        %v419 = vsub.f32 %v393, %v416
        %v420 = vsub.f32 %v394, %v416
        %v421 = vmul.f32 %v417, %v417
        %v422 = vmul.f32 %v418, %v418
        %v423 = vmul.f32 %v419, %v419
        %v424 = vmul.f32 %v420, %v420
        %v425 = vsel %vm395, %v421, 0.0
        %v426 = vsel %vm395, %v422, 0.0
        %v427 = vadd.f32 %v425, %v426
        %v428 = vrot.slane %v427, 4
        %v429 = vadd.f32 %v427, %v428
        %v430 = vrot.slane %v429, 2
        %v431 = vadd.f32 %v429, %v430
        %v432 = vrot.slane %v431, 1
        %v433 = vadd.f32 %v431, %v432
        %v434 = vsel %vm395, %v423, 0.0
        %v435 = vsel %vm395, %v424, 0.0
        %v436 = vadd.f32 %v434, %v435
        %v437 = vrot.slane %v436, 4
        %v438 = vadd.f32 %v436, %v437
        %v439 = vrot.slane %v438, 2
        %v440 = vadd.f32 %v438, %v439
        %v441 = vrot.slane %v440, 1
        %v442 = vadd.f32 %v440, %v441
        %v443 = vmul.f32 %v433, 0.06666667
        %v444 = vmul.f32 %v442, 0.06666667
        %v445 = vrsqrt.pop %v443
        %v446 = vmul.f32 %v443, %v445
        %vm447 = vcmp.eq.f32.partialorder %v443, inf
        %v448 = vsel %vm447, %v443, %v446
        %vm449 = vcmp.eq.f32.partialorder %v443, 0.0
        %v450 = vand.u32 %v443, 2147483648
        %v451 = vsel %vm449, %v450, %v448
        %v452 = vrsqrt.pop %v444
        %v453 = vmul.f32 %v444, %v452
        %vm454 = vcmp.eq.f32.partialorder %v444, inf
        %v455 = vsel %vm454, %v444, %v453
        %vm456 = vcmp.eq.f32.partialorder %v444, 0.0
        %v457 = vand.u32 %v444, 2147483648
        %v458 = vsel %vm456, %v457, %v455
        %v459 = vadd.f32 %v451, 1e-05
        %v460 = vadd.f32 %v458, 1e-05
        %v461 = vrcp.pop %v459
        %v462 = vmul.f32 1.0, %v461
        %v463 = vrcp.pop %v460
        %v464 = vmul.f32 1.0, %v463
        %v465 = vld [vmem:[%s9] sm:$0x1]
        %v466 = vld [vmem:[%s10] sm:$0x1]
        %v467 = vmul.f32 %v417, %v462
        %v468 = vmul.f32 %v418, %v462
        %v469 = vmul.f32 %v419, %v464
        %v470 = vmul.f32 %v420, %v464
        %v472 = vlaneseq
        %v473 = vshrl.u32 %v472, 7
        %v474 = vsub.s32 0, %v473
        %v475 = vrot.slane %v465, %v474
        %v477 = vmul.f32 %v467, %v475
        %v478 = vmul.f32 %v468, %v475
        %v479 = vmul.f32 %v469, %v475
        %v480 = vmul.f32 %v470, %v475
        %v482 = vlaneseq
        %v483 = vshrl.u32 %v482, 7
        %v484 = vsub.s32 0, %v483
        %v485 = vrot.slane %v466, %v484
        %v487 = vadd.f32 %v477, %v485
        %v488 = vadd.f32 %v478, %v485
        %v489 = vadd.f32 %v479, %v485
        %v490 = vadd.f32 %v480, %v485
        loop: start=0, step=1, limit=2
        $region65: #{tpu_custom_call.1} parent=63 // loop_pre_header
          _
        $region66: #{tpu_custom_call.1} parent=63 // loop_header
          %s492 = sphi 0, %s496
          %p493 = scmp.ge.s32.totalorder %s492, 2
          %v497 = vphi %v487, %v907
          %v498 = vphi %v488, %v908
          %v499 = vphi %v489, %v909
          %v500 = vphi %v490, %v910
        $region67: #{tpu_custom_call.1} parent=63 // loop_header_branch
          %495 = sbr.rel (%p493) target = $region71
        $region68: #{tpu_custom_call.1} parent=63 // loop_body
          %s501 = smul.u32 %s492, 16
          %s502 = scalar_lea.vmem %s1, %s501
          %v503 = vld [vmem:[%s502] sm:$0xff]
          %v504 = vld [vmem:[%s502 + $0x8] sm:$0xff]
          %s505 = scalar_lea.vmem %s2, %s501
          %v506 = vld [vmem:[%s505] sm:$0xff]
          %v507 = vld [vmem:[%s505 + $0x8] sm:$0xff]
          %509 = vset.pattern.permute.xlu0 0
          %510 = vperm.xlu0 %509, %v506
          %v511 = vpop.permute.xlu0 %510
          %514 = vset.pattern.permute.xlu0 0
          %515 = vperm.xlu0 %514, %v507
          %v516 = vpop.permute.xlu0 %515
          %vm518 = vcmask 130048
          %v520 = vsel %vm518, %v503, 0
          %v523 = vsel %vm518, %v504, 0
          %525 = vmatprep.subr.mxu0 0.0
          %526 = vmatpush1.msra.mxu0 0.0
          %527 = vmatprep.subr.mxu0 0.0
          %528 = vmatpush1.msra.mxu0 0.0
          %529 = vmatprep.subr.mxu0 0.0
          %530 = vmatpush1.msra.mxu0 0.0
          %531 = vmatprep.subr.mxu0 0.0
          %532 = vmatpush1.msra.mxu0 0.0
          %533 = vmatprep.subr.mxu0 0.0
          %534 = vmatpush1.msra.mxu0 0.0
          %535 = vmatprep.subr.mxu0 0.0
          %536 = vmatpush1.msra.mxu0 0.0
          %537 = vmatprep.subr.mxu0 0.0
          %538 = vmatpush1.msra.mxu0 0.0
          %539 = vmatprep.subr.mxu0 0.0
          %540 = vmatpush1.msra.mxu0 0.0
          %541 = vmatprep.subr.mxu0 0.0
          %542 = vmatpush1.msra.mxu0 0.0
          %543 = vmatprep.subr.mxu0 0.0
          %544 = vmatpush1.msra.mxu0 0.0
          %545 = vmatprep.subr.mxu0 0.0
          %546 = vmatpush1.msra.mxu0 0.0
          %547 = vmatprep.subr.mxu0 0.0
          %548 = vmatpush1.msra.mxu0 0.0
          %549 = vmatprep.subr.mxu0 0.0
          %550 = vmatpush1.msra.mxu0 0.0
          %551 = vmatprep.subr.mxu0 0.0
          %552 = vmatpush1.msra.mxu0 0.0
          %553 = vmatprep.subr.mxu0 0.0
          %554 = vmatpush1.msra.mxu0 %v498
          %555 = vmatprep.subr.mxu0 0.0
          %556 = vmatpush1.msra.mxu0 %v497
          %557 = vmatprep.subr.mxu0 0.0
          %558 = vmatpush2.msra.mxu0 0.0
          %559 = vmatprep.subr.mxu0 0.0
          %560 = vmatpush2.msra.mxu0 0.0
          %561 = vmatprep.subr.mxu0 0.0
          %562 = vmatpush2.msra.mxu0 0.0
          %563 = vmatprep.subr.mxu0 0.0
          %564 = vmatpush2.msra.mxu0 0.0
          %565 = vmatprep.subr.mxu0 0.0
          %566 = vmatpush2.msra.mxu0 0.0
          %567 = vmatprep.subr.mxu0 0.0
          %568 = vmatpush2.msra.mxu0 0.0
          %569 = vmatprep.subr.mxu0 0.0
          %570 = vmatpush2.msra.mxu0 0.0
          %571 = vmatprep.subr.mxu0 0.0
          %572 = vmatpush2.msra.mxu0 0.0
          %573 = vmatprep.subr.mxu0 0.0
          %574 = vmatpush2.msra.mxu0 0.0
          %575 = vmatprep.subr.mxu0 0.0
          %576 = vmatpush2.msra.mxu0 0.0
          %577 = vmatprep.subr.mxu0 0.0
          %578 = vmatpush2.msra.mxu0 0.0
          %579 = vmatprep.subr.mxu0 0.0
          %580 = vmatpush2.msra.mxu0 0.0
          %581 = vmatprep.subr.mxu0 0.0
          %582 = vmatpush2.msra.mxu0 0.0
          %583 = vmatprep.subr.mxu0 0.0
          %584 = vmatpush2.msra.mxu0 0.0
          %585 = vmatprep.subr.mxu0 0.0
          %586 = vmatpush2.msra.mxu0 0.0
          %587 = vmatprep.subr.mxu0 0.0
          %588 = vmatpush2.msra.mxu0 0.0
          %589 = vmatprep.mubr.f32.mxu0 0.0
          %590 = vmatmul.mubr.f32.gmra.mxu0 %v520
          %v591 = vpop.f32.mrf.mxu0
          %v592 = vadd.f32 %v511, %v591
          %v593 = vpop.f32.mrf.mxu0
          %594 = vmatprep.mubr.f32.mxu0 0.0
          %595 = vmatmul.mubr.f32.gmra.mxu0 %v523
          %v596 = vpop.f32.mrf.mxu0
          %v597 = vadd.f32 %v516, %v596
          %v598 = vpop.f32.mrf.mxu0
          %599 = vdwg.mxu0
          %600 = vmatprep.subr.mxu0 0.0
          %601 = vmatpush1.msra.mxu0 0.0
          %602 = vmatprep.subr.mxu0 0.0
          %603 = vmatpush1.msra.mxu0 0.0
          %604 = vmatprep.subr.mxu0 0.0
          %605 = vmatpush1.msra.mxu0 0.0
          %606 = vmatprep.subr.mxu0 0.0
          %607 = vmatpush1.msra.mxu0 0.0
          %608 = vmatprep.subr.mxu0 0.0
          %609 = vmatpush1.msra.mxu0 0.0
          %610 = vmatprep.subr.mxu0 0.0
          %611 = vmatpush1.msra.mxu0 0.0
          %612 = vmatprep.subr.mxu0 0.0
          %613 = vmatpush1.msra.mxu0 0.0
          %614 = vmatprep.subr.mxu0 0.0
          %615 = vmatpush1.msra.mxu0 0.0
          %616 = vmatprep.subr.mxu0 0.0
          %617 = vmatpush1.msra.mxu0 0.0
          %618 = vmatprep.subr.mxu0 0.0
          %619 = vmatpush1.msra.mxu0 0.0
          %620 = vmatprep.subr.mxu0 0.0
          %621 = vmatpush1.msra.mxu0 0.0
          %622 = vmatprep.subr.mxu0 0.0
          %623 = vmatpush1.msra.mxu0 0.0
          %624 = vmatprep.subr.mxu0 0.0
          %625 = vmatpush1.msra.mxu0 0.0
          %626 = vmatprep.subr.mxu0 0.0
          %627 = vmatpush1.msra.mxu0 0.0
          %628 = vmatprep.subr.mxu0 0.0
          %629 = vmatpush1.msra.mxu0 %v500
          %630 = vmatprep.subr.mxu0 0.0
          %631 = vmatpush1.msra.mxu0 %v499
          %632 = vmatprep.subr.mxu0 0.0
          %633 = vmatpush2.msra.mxu0 0.0
          %634 = vmatprep.subr.mxu0 0.0
          %635 = vmatpush2.msra.mxu0 0.0
          %636 = vmatprep.subr.mxu0 0.0
          %637 = vmatpush2.msra.mxu0 0.0
          %638 = vmatprep.subr.mxu0 0.0
          %639 = vmatpush2.msra.mxu0 0.0
          %640 = vmatprep.subr.mxu0 0.0
          %641 = vmatpush2.msra.mxu0 0.0
          %642 = vmatprep.subr.mxu0 0.0
          %643 = vmatpush2.msra.mxu0 0.0
          %644 = vmatprep.subr.mxu0 0.0
          %645 = vmatpush2.msra.mxu0 0.0
          %646 = vmatprep.subr.mxu0 0.0
          %647 = vmatpush2.msra.mxu0 0.0
          %648 = vmatprep.subr.mxu0 0.0
          %649 = vmatpush2.msra.mxu0 0.0
          %650 = vmatprep.subr.mxu0 0.0
          %651 = vmatpush2.msra.mxu0 0.0
          %652 = vmatprep.subr.mxu0 0.0
          %653 = vmatpush2.msra.mxu0 0.0
          %654 = vmatprep.subr.mxu0 0.0
          %655 = vmatpush2.msra.mxu0 0.0
          %656 = vmatprep.subr.mxu0 0.0
          %657 = vmatpush2.msra.mxu0 0.0
          %658 = vmatprep.subr.mxu0 0.0
          %659 = vmatpush2.msra.mxu0 0.0
          %660 = vmatprep.subr.mxu0 0.0
          %661 = vmatpush2.msra.mxu0 0.0
          %662 = vmatprep.subr.mxu0 0.0
          %663 = vmatpush2.msra.mxu0 0.0
          %664 = vmatprep.mubr.f32.mxu0 0.0
          %665 = vmatmul.mubr.f32.gmra.mxu0 %v520
          %v666 = vpop.f32.mrf.mxu0
          %v667 = vadd.f32 %v511, %v666
          %v668 = vpop.f32.mrf.mxu0
          %669 = vmatprep.mubr.f32.mxu0 0.0
          %670 = vmatmul.mubr.f32.gmra.mxu0 %v523
          %v671 = vpop.f32.mrf.mxu0
          %v672 = vadd.f32 %v516, %v671
          %v673 = vpop.f32.mrf.mxu0
          %674 = vdwg.mxu0
          %v675 = vmax.f32 %v592, 0.0
          %v676 = vmax.f32 %v597, 0.0
          %v677 = vmax.f32 %v667, 0.0
          %v678 = vmax.f32 %v672, 0.0
          %v679 = vadd.f32 %v675, %v497
          %v680 = vadd.f32 %v676, %v498
          %v681 = vadd.f32 %v677, %v499
          %v682 = vadd.f32 %v678, %v500
          %s683 = smul.u32 %s492, 8
          %s684 = scalar_lea.vmem %s3, %s683
          %v685 = vld [vmem:[%s684] sm:$0xff]
          %s686 = scalar_lea.vmem %s4, %s492
          %v687 = vld [vmem:[%s686] sm:$0x1]
          %v689 = vlaneseq
          %v690 = vshrl.u32 %v689, 7
          %v691 = vsub.s32 0, %v690
          %v692 = vrot.slane %v687, %v691
          %v695 = vsel %vm395, %v679, 0
          %v698 = vsel %vm395, %v680, 0
          %v701 = vsel %vm395, %v681, 0
          %v704 = vsel %vm395, %v682, 0
          %706 = vmatprep.subr.mxu0 0.0
          %707 = vmatpush1.msra.mxu0 0.0
          %708 = vmatprep.subr.mxu0 0.0
          %709 = vmatpush1.msra.mxu0 0.0
          %710 = vmatprep.subr.mxu0 0.0
          %711 = vmatpush1.msra.mxu0 0.0
          %712 = vmatprep.subr.mxu0 0.0
          %713 = vmatpush1.msra.mxu0 0.0
          %714 = vmatprep.subr.mxu0 0.0
          %715 = vmatpush1.msra.mxu0 0.0
          %716 = vmatprep.subr.mxu0 0.0
          %717 = vmatpush1.msra.mxu0 0.0
          %718 = vmatprep.subr.mxu0 0.0
          %719 = vmatpush1.msra.mxu0 0.0
          %720 = vmatprep.subr.mxu0 0.0
          %721 = vmatpush1.msra.mxu0 0.0
          %722 = vmatprep.subr.mxu0 0.0
          %723 = vmatpush1.msra.mxu0 0.0
          %724 = vmatprep.subr.mxu0 0.0
          %725 = vmatpush1.msra.mxu0 0.0
          %726 = vmatprep.subr.mxu0 0.0
          %727 = vmatpush1.msra.mxu0 0.0
          %728 = vmatprep.subr.mxu0 0.0
          %729 = vmatpush1.msra.mxu0 0.0
          %730 = vmatprep.subr.mxu0 0.0
          %731 = vmatpush1.msra.mxu0 0.0
          %732 = vmatprep.subr.mxu0 0.0
          %733 = vmatpush1.msra.mxu0 0.0
          %734 = vmatprep.subr.mxu0 0.0
          %735 = vmatpush1.msra.mxu0 0.0
          %736 = vmatprep.subr.mxu0 0.0
          %737 = vmatpush1.msra.mxu0 %v685
          %738 = vmatprep.subr.mxu0 0.0
          %739 = vmatpush2.msra.mxu0 0.0
          %740 = vmatprep.subr.mxu0 0.0
          %741 = vmatpush2.msra.mxu0 0.0
          %742 = vmatprep.subr.mxu0 0.0
          %743 = vmatpush2.msra.mxu0 0.0
          %744 = vmatprep.subr.mxu0 0.0
          %745 = vmatpush2.msra.mxu0 0.0
          %746 = vmatprep.subr.mxu0 0.0
          %747 = vmatpush2.msra.mxu0 0.0
          %748 = vmatprep.subr.mxu0 0.0
          %749 = vmatpush2.msra.mxu0 0.0
          %750 = vmatprep.subr.mxu0 0.0
          %751 = vmatpush2.msra.mxu0 0.0
          %752 = vmatprep.subr.mxu0 0.0
          %753 = vmatpush2.msra.mxu0 0.0
          %754 = vmatprep.subr.mxu0 0.0
          %755 = vmatpush2.msra.mxu0 0.0
          %756 = vmatprep.subr.mxu0 0.0
          %757 = vmatpush2.msra.mxu0 0.0
          %758 = vmatprep.subr.mxu0 0.0
          %759 = vmatpush2.msra.mxu0 0.0
          %760 = vmatprep.subr.mxu0 0.0
          %761 = vmatpush2.msra.mxu0 0.0
          %762 = vmatprep.subr.mxu0 0.0
          %763 = vmatpush2.msra.mxu0 0.0
          %764 = vmatprep.subr.mxu0 0.0
          %765 = vmatpush2.msra.mxu0 0.0
          %766 = vmatprep.subr.mxu0 0.0
          %767 = vmatpush2.msra.mxu0 0.0
          %768 = vmatprep.subr.mxu0 0.0
          %769 = vmatpush2.msra.mxu0 0.0
          %770 = vmatprep.mubr.f32.mxu0 0.0
          %771 = vmatmul.mubr.f32.gmra.mxu0 %v695
          %v772 = vpop.f32.mrf.mxu0
          %v773 = vadd.f32 %v692, %v772
          %v774 = vpop.f32.mrf.mxu0
          %775 = vmatprep.mubr.f32.mxu0 0.0
          %776 = vmatmul.mubr.f32.gmra.mxu0 %v698
          %v777 = vpop.f32.mrf.mxu0
          %v778 = vadd.f32 %v692, %v777
          %v779 = vpop.f32.mrf.mxu0
          %780 = vmatprep.mubr.f32.mxu0 0.0
          %781 = vmatmul.mubr.f32.gmra.mxu0 %v701
          %v782 = vpop.f32.mrf.mxu0
          %v783 = vadd.f32 %v692, %v782
          %v784 = vpop.f32.mrf.mxu0
          %785 = vmatprep.mubr.f32.mxu0 0.0
          %786 = vmatmul.mubr.f32.gmra.mxu0 %v704
          %v787 = vpop.f32.mrf.mxu0
          %v788 = vadd.f32 %v692, %v787
          %v789 = vpop.f32.mrf.mxu0
          %790 = vdwg.mxu0
          %v791 = vmax.f32 %v773, 0.0
          %v792 = vmax.f32 %v778, 0.0
          %v793 = vmax.f32 %v783, 0.0
          %v794 = vmax.f32 %v788, 0.0
          %s795 = smul.u32 %s492, 32
          %s796 = scalar_lea.vmem %s5, %s795
          %v797 = vld [vmem:[%s796] sm:$0xff]
          %v798 = vld [vmem:[%s796 + $0x8] sm:$0xff]
          %v799 = vld [vmem:[%s796 + $0x10] sm:$0xff]
          %v800 = vld [vmem:[%s796 + $0x18] sm:$0xff]
          %s801 = scalar_lea.vmem %s6, %s492
          %v802 = vld [vmem:[%s801] sm:$0x1]
          %v804 = vlaneseq
          %v805 = vshrl.u32 %v804, 7
          %v806 = vsub.s32 0, %v805
          %v807 = vrot.slane %v802, %v806
          %vm809 = vcmask 261120
          %v811 = vsel %vm809, %v791, 0
          %v814 = vsel %vm809, %v792, 0
          %v817 = vsel %vm809, %v793, 0
          %v820 = vsel %vm809, %v794, 0
          %822 = vmatprep.subr.mxu0 0.0
          %823 = vmatpush1.msra.mxu0 0.0
          %824 = vmatprep.subr.mxu0 0.0
          %825 = vmatpush1.msra.mxu0 0.0
          %826 = vmatprep.subr.mxu0 0.0
          %827 = vmatpush1.msra.mxu0 0.0
          %828 = vmatprep.subr.mxu0 0.0
          %829 = vmatpush1.msra.mxu0 0.0
          %830 = vmatprep.subr.mxu0 0.0
          %831 = vmatpush1.msra.mxu0 0.0
          %832 = vmatprep.subr.mxu0 0.0
          %833 = vmatpush1.msra.mxu0 0.0
          %834 = vmatprep.subr.mxu0 0.0
          %835 = vmatpush1.msra.mxu0 0.0
          %836 = vmatprep.subr.mxu0 0.0
          %837 = vmatpush1.msra.mxu0 0.0
          %838 = vmatprep.subr.mxu0 0.0
          %839 = vmatpush1.msra.mxu0 0.0
          %840 = vmatprep.subr.mxu0 0.0
          %841 = vmatpush1.msra.mxu0 0.0
          %842 = vmatprep.subr.mxu0 0.0
          %843 = vmatpush1.msra.mxu0 0.0
          %844 = vmatprep.subr.mxu0 0.0
          %845 = vmatpush1.msra.mxu0 0.0
          %846 = vmatprep.subr.mxu0 0.0
          %847 = vmatpush1.msra.mxu0 %v800
          %848 = vmatprep.subr.mxu0 0.0
          %849 = vmatpush1.msra.mxu0 %v799
          %850 = vmatprep.subr.mxu0 0.0
          %851 = vmatpush1.msra.mxu0 %v798
          %852 = vmatprep.subr.mxu0 0.0
          %853 = vmatpush1.msra.mxu0 %v797
          %854 = vmatprep.subr.mxu0 0.0
          %855 = vmatpush2.msra.mxu0 0.0
          %856 = vmatprep.subr.mxu0 0.0
          %857 = vmatpush2.msra.mxu0 0.0
          %858 = vmatprep.subr.mxu0 0.0
          %859 = vmatpush2.msra.mxu0 0.0
          %860 = vmatprep.subr.mxu0 0.0
          %861 = vmatpush2.msra.mxu0 0.0
          %862 = vmatprep.subr.mxu0 0.0
          %863 = vmatpush2.msra.mxu0 0.0
          %864 = vmatprep.subr.mxu0 0.0
          %865 = vmatpush2.msra.mxu0 0.0
          %866 = vmatprep.subr.mxu0 0.0
          %867 = vmatpush2.msra.mxu0 0.0
          %868 = vmatprep.subr.mxu0 0.0
          %869 = vmatpush2.msra.mxu0 0.0
          %870 = vmatprep.subr.mxu0 0.0
          %871 = vmatpush2.msra.mxu0 0.0
          %872 = vmatprep.subr.mxu0 0.0
          %873 = vmatpush2.msra.mxu0 0.0
          %874 = vmatprep.subr.mxu0 0.0
          %875 = vmatpush2.msra.mxu0 0.0
          %876 = vmatprep.subr.mxu0 0.0
          %877 = vmatpush2.msra.mxu0 0.0
          %878 = vmatprep.subr.mxu0 0.0
          %879 = vmatpush2.msra.mxu0 0.0
          %880 = vmatprep.subr.mxu0 0.0
          %881 = vmatpush2.msra.mxu0 0.0
          %882 = vmatprep.subr.mxu0 0.0
          %883 = vmatpush2.msra.mxu0 0.0
          %884 = vmatprep.subr.mxu0 0.0
          %885 = vmatpush2.msra.mxu0 0.0
          %886 = vmatprep.mubr.f32.mxu0 0.0
          %887 = vmatmul.mubr.f32.gmra.mxu0 %v811
          %v888 = vpop.f32.mrf.mxu0
          %v889 = vadd.f32 %v807, %v888
          %v890 = vpop.f32.mrf.mxu0
          %891 = vmatprep.mubr.f32.mxu0 0.0
          %892 = vmatmul.mubr.f32.gmra.mxu0 %v814
          %v893 = vpop.f32.mrf.mxu0
          %v894 = vadd.f32 %v807, %v893
          %v895 = vpop.f32.mrf.mxu0
          %896 = vmatprep.mubr.f32.mxu0 0.0
          %897 = vmatmul.mubr.f32.gmra.mxu0 %v817
          %v898 = vpop.f32.mrf.mxu0
          %v899 = vadd.f32 %v807, %v898
          %v900 = vpop.f32.mrf.mxu0
          %901 = vmatprep.mubr.f32.mxu0 0.0
          %902 = vmatmul.mubr.f32.gmra.mxu0 %v820
          %v903 = vpop.f32.mrf.mxu0
          %v904 = vadd.f32 %v807, %v903
          %v905 = vpop.f32.mrf.mxu0
          %906 = vdwg.mxu0
          %v907 = vadd.f32 %v889, %v679
          %v908 = vadd.f32 %v894, %v680
          %v909 = vadd.f32 %v899, %v681
          %v910 = vadd.f32 %v904, %v682
        $region69: #{tpu_custom_call.1} parent=63 // loop_footer
          %s496 = sadd.s32 1, %s492
        $region70: #{tpu_custom_call.1} parent=63 // loop_footer_branch
          %491 = sbr.rel target = $region66
        $region71: #{tpu_custom_call.1} parent=63 // loop_exit
          _
        %v911 = vld [vmem:[%s7] sm:$0xff]
        %v912 = vld [vmem:[%s8] sm:$0xff]
        %914 = vset.pattern.permute.xlu0 0
        %915 = vperm.xlu0 %914, %v912
        %v916 = vpop.permute.xlu0 %915
        %vm918 = vcmask 130048
        %v920 = vsel %vm918, %v911, 0
        %922 = vmatprep.subr.mxu0 0.0
        %923 = vmatpush1.msra.mxu0 0.0
        %924 = vmatprep.subr.mxu0 0.0
        %925 = vmatpush1.msra.mxu0 0.0
        %926 = vmatprep.subr.mxu0 0.0
        %927 = vmatpush1.msra.mxu0 0.0
        %928 = vmatprep.subr.mxu0 0.0
        %929 = vmatpush1.msra.mxu0 0.0
        %930 = vmatprep.subr.mxu0 0.0
        %931 = vmatpush1.msra.mxu0 0.0
        %932 = vmatprep.subr.mxu0 0.0
        %933 = vmatpush1.msra.mxu0 0.0
        %934 = vmatprep.subr.mxu0 0.0
        %935 = vmatpush1.msra.mxu0 0.0
        %936 = vmatprep.subr.mxu0 0.0
        %937 = vmatpush1.msra.mxu0 0.0
        %938 = vmatprep.subr.mxu0 0.0
        %939 = vmatpush1.msra.mxu0 0.0
        %940 = vmatprep.subr.mxu0 0.0
        %941 = vmatpush1.msra.mxu0 0.0
        %942 = vmatprep.subr.mxu0 0.0
        %943 = vmatpush1.msra.mxu0 0.0
        %944 = vmatprep.subr.mxu0 0.0
        %945 = vmatpush1.msra.mxu0 0.0
        %946 = vmatprep.subr.mxu0 0.0
        %947 = vmatpush1.msra.mxu0 0.0
        %948 = vmatprep.subr.mxu0 0.0
        %949 = vmatpush1.msra.mxu0 0.0
        %950 = vmatprep.subr.mxu0 0.0
        %951 = vmatpush1.msra.mxu0 %v498
        %952 = vmatprep.subr.mxu0 0.0
        %953 = vmatpush1.msra.mxu0 %v497
        %954 = vmatprep.subr.mxu0 0.0
        %955 = vmatpush2.msra.mxu0 0.0
        %956 = vmatprep.subr.mxu0 0.0
        %957 = vmatpush2.msra.mxu0 0.0
        %958 = vmatprep.subr.mxu0 0.0
        %959 = vmatpush2.msra.mxu0 0.0
        %960 = vmatprep.subr.mxu0 0.0
        %961 = vmatpush2.msra.mxu0 0.0
        %962 = vmatprep.subr.mxu0 0.0
        %963 = vmatpush2.msra.mxu0 0.0
        %964 = vmatprep.subr.mxu0 0.0
        %965 = vmatpush2.msra.mxu0 0.0
        %966 = vmatprep.subr.mxu0 0.0
        %967 = vmatpush2.msra.mxu0 0.0
        %968 = vmatprep.subr.mxu0 0.0
        %969 = vmatpush2.msra.mxu0 0.0
        %970 = vmatprep.subr.mxu0 0.0
        %971 = vmatpush2.msra.mxu0 0.0
        %972 = vmatprep.subr.mxu0 0.0
        %973 = vmatpush2.msra.mxu0 0.0
        %974 = vmatprep.subr.mxu0 0.0
        %975 = vmatpush2.msra.mxu0 0.0
        %976 = vmatprep.subr.mxu0 0.0
        %977 = vmatpush2.msra.mxu0 0.0
        %978 = vmatprep.subr.mxu0 0.0
        %979 = vmatpush2.msra.mxu0 0.0
        %980 = vmatprep.subr.mxu0 0.0
        %981 = vmatpush2.msra.mxu0 0.0
        %982 = vmatprep.subr.mxu0 0.0
        %983 = vmatpush2.msra.mxu0 0.0
        %984 = vmatprep.subr.mxu0 0.0
        %985 = vmatpush2.msra.mxu0 0.0
        %986 = vmatprep.mubr.f32.mxu0 0.0
        %987 = vmatmul.mubr.f32.gmra.mxu0 %v920
        %v988 = vpop.f32.mrf.mxu0
        %v989 = vadd.f32 %v916, %v988
        %v990 = vpop.f32.mrf.mxu0
        %991 = vdwg.mxu0
        %992 = vmatprep.subr.mxu0 0.0
        %993 = vmatpush1.msra.mxu0 0.0
        %994 = vmatprep.subr.mxu0 0.0
        %995 = vmatpush1.msra.mxu0 0.0
        %996 = vmatprep.subr.mxu0 0.0
        %997 = vmatpush1.msra.mxu0 0.0
        %998 = vmatprep.subr.mxu0 0.0
        %999 = vmatpush1.msra.mxu0 0.0
        %1000 = vmatprep.subr.mxu0 0.0
        %1001 = vmatpush1.msra.mxu0 0.0
        %1002 = vmatprep.subr.mxu0 0.0
        %1003 = vmatpush1.msra.mxu0 0.0
        %1004 = vmatprep.subr.mxu0 0.0
        %1005 = vmatpush1.msra.mxu0 0.0
        %1006 = vmatprep.subr.mxu0 0.0
        %1007 = vmatpush1.msra.mxu0 0.0
        %1008 = vmatprep.subr.mxu0 0.0
        %1009 = vmatpush1.msra.mxu0 0.0
        %1010 = vmatprep.subr.mxu0 0.0
        %1011 = vmatpush1.msra.mxu0 0.0
        %1012 = vmatprep.subr.mxu0 0.0
        %1013 = vmatpush1.msra.mxu0 0.0
        %1014 = vmatprep.subr.mxu0 0.0
        %1015 = vmatpush1.msra.mxu0 0.0
        %1016 = vmatprep.subr.mxu0 0.0
        %1017 = vmatpush1.msra.mxu0 0.0
        %1018 = vmatprep.subr.mxu0 0.0
        %1019 = vmatpush1.msra.mxu0 0.0
        %1020 = vmatprep.subr.mxu0 0.0
        %1021 = vmatpush1.msra.mxu0 %v500
        %1022 = vmatprep.subr.mxu0 0.0
        %1023 = vmatpush1.msra.mxu0 %v499
        %1024 = vmatprep.subr.mxu0 0.0
        %1025 = vmatpush2.msra.mxu0 0.0
        %1026 = vmatprep.subr.mxu0 0.0
        %1027 = vmatpush2.msra.mxu0 0.0
        %1028 = vmatprep.subr.mxu0 0.0
        %1029 = vmatpush2.msra.mxu0 0.0
        %1030 = vmatprep.subr.mxu0 0.0
        %1031 = vmatpush2.msra.mxu0 0.0
        %1032 = vmatprep.subr.mxu0 0.0
        %1033 = vmatpush2.msra.mxu0 0.0
        %1034 = vmatprep.subr.mxu0 0.0
        %1035 = vmatpush2.msra.mxu0 0.0
        %1036 = vmatprep.subr.mxu0 0.0
        %1037 = vmatpush2.msra.mxu0 0.0
        %1038 = vmatprep.subr.mxu0 0.0
        %1039 = vmatpush2.msra.mxu0 0.0
        %1040 = vmatprep.subr.mxu0 0.0
        %1041 = vmatpush2.msra.mxu0 0.0
        %1042 = vmatprep.subr.mxu0 0.0
        %1043 = vmatpush2.msra.mxu0 0.0
        %1044 = vmatprep.subr.mxu0 0.0
        %1045 = vmatpush2.msra.mxu0 0.0
        %1046 = vmatprep.subr.mxu0 0.0
        %1047 = vmatpush2.msra.mxu0 0.0
        %1048 = vmatprep.subr.mxu0 0.0
        %1049 = vmatpush2.msra.mxu0 0.0
        %1050 = vmatprep.subr.mxu0 0.0
        %1051 = vmatpush2.msra.mxu0 0.0
        %1052 = vmatprep.subr.mxu0 0.0
        %1053 = vmatpush2.msra.mxu0 0.0
        %1054 = vmatprep.subr.mxu0 0.0
        %1055 = vmatpush2.msra.mxu0 0.0
        %1056 = vmatprep.mubr.f32.mxu0 0.0
        %1057 = vmatmul.mubr.f32.gmra.mxu0 %v920
        %v1058 = vpop.f32.mrf.mxu0
        %v1059 = vadd.f32 %v916, %v1058
        %v1060 = vpop.f32.mrf.mxu0
        %1061 = vdwg.mxu0
        %v1062 = vrcp.pop %v465
        %v1063 = vmul.f32 1.0, %v1062
        %v1064 = vsub.f32 %v989, %v485
        %v1065 = vsub.f32 %v1059, %v485
        %v1067 = vlaneseq
        %v1068 = vshrl.u32 %v1067, 7
        %v1069 = vsub.s32 0, %v1068
        %v1070 = vrot.slane %v1063, %v1069
        %v1072 = vmul.f32 %v1064, %v1070
        %v1073 = vmul.f32 %v1065, %v1070
        %v1074 = vmul.f32 %v1072, %v451
        %v1075 = vmul.f32 %v1073, %v458
        %v1076 = vadd.f32 %v1074, %v415
        %v1077 = vadd.f32 %v1075, %v416
        %1078 = vst.msk [vmem:[%s382] sm:$0xff] %vm395, %v1076
        %1079 = vst.msk [vmem:[%s382 + $0x8] sm:$0xff] %vm395, %v1077
        %s1080 = sand.u32 %s269, 1
        %s1081 = scalar_lea.sflag [#allocation3], %s1080
        %s1082 = sand.u32 %s269, 1
        %s1083 = smul.addr %s1082, 16
        %s1084 = scalar_lea.vmem [#allocation2], %s1083
        // Predicated region
        $region72: #{tpu_custom_call.1} parent=63 // pred_check
          %p1085 = pneg %p279
        $region73: #{tpu_custom_call.1} parent=63 // pred_check_branch
          %1087 = sbr.rel (%p1085) target = $region75
        $region74: #{tpu_custom_call.1} parent=63 // pred_region
          %s1088 = smul.u32 2, %s25
          %s1090 = ssub.s32 256, 256
          %1091 = vsyncadd %s1081, %s1090
          %s1092 = smul.addr %s1088, 128
          %s1093 = scalar_lea.hbm %s11, %s1092
          %s1094 = sshll.u32 %s1084, 4
          %s1095 = int_to_ptr.vmem [resolvable:$true] %s1094
          %1100 = dma.vmem_to_hbm [thread:$0]  %s1095, 256, %s1093, %s1081, 128, 128, 8
        $region75: #{tpu_custom_call.1} parent=63 // pred_fallthru
          _
      $region64: #{tpu_custom_call.1} parent=5 // pred_fallthru
        _
      %p1101 = scmp.le.s32.totalorder 2, %s20
      // Predicated region
      $region76: #{tpu_custom_call.1} parent=5 // pred_check
        %p1102 = pneg %p1101
      $region77: #{tpu_custom_call.1} parent=5 // pred_check_branch
        %1104 = sbr.rel (%p1102) target = $region79
      $region78: #{tpu_custom_call.1} parent=5 // pred_region
        %s1105 = ssub.s32 %s20, 2
        // Predicated region
        $region80: #{tpu_custom_call.1} parent=78 // pred_check
          %p1106 = pneg %p285
        $region81: #{tpu_custom_call.1} parent=78 // pred_check_branch
          %1108 = sbr.rel (%p1106) target = $region83
        $region82: #{tpu_custom_call.1} parent=78 // pred_region
          %s1109 = sand.u32 %s270, 1
          %s1110 = scalar_lea.sflag [#allocation3], %s1109
          %s1111 = sand.u32 %s270, 1
          %s1112 = smul.addr %s1111, 16
          %s1113 = scalar_lea.vmem [#allocation2], %s1112
          %1114 = dma.done %s1110, 256
        $region83: #{tpu_custom_call.1} parent=78 // pred_fallthru
          _
      $region79: #{tpu_custom_call.1} parent=5 // pred_fallthru
        _
    $region6: #{tpu_custom_call.1} parent=1 // loop_footer
      %s24 = sadd.s32 1, %s20
    $region7: #{tpu_custom_call.1} parent=1 // loop_footer_branch
      %19 = sbr.rel target = $region3
    $region8: #{tpu_custom_call.1} parent=1 // loop_exit
      _
    %1115 = vsyncpa [#allocation3], 1
    %s1116 = scalar_lea.sflag [#allocation3], 1
    %1117 = vsyncpa %s1116, 1

</llo_original>
